<compile_context>
chip_gen: v7x
topology: tpu7x:2x2x1
jax: 0.10.0
libtpu: 0.0.40
codegen_flags: <defaults>
</compile_context>

<pallas_src>
import numpy as np
import jax
import jax.numpy as jnp
from jax.experimental import pallas as pl
from jax.experimental.pallas import tpu as pltpu

# ---- module config (small, consistent with the module's forward) -----------
B = 2
MODAL_HIDDEN = 32        # config.modal_hidden_size == channels of input_modal
IMG = 8                  # spatial H == W of input_modal
S_MODAL = 8              # tokens produced by the synthetic encoder
HIDDEN = 32              # config.hidden_size
SEQ = S_MODAL + 2        # + start_token + end_token
VOCAB = 64
MAX_POS = 128
TYPE_VOCAB = 2
LN_EPS = 1e-12

# ---- derived kernel geometry -------------------------------------------------
M = B * SEQ                                   # 20 real output rows
M_PAD = ((M + 7) // 8) * 8                    # 24 : sublane-aligned output rows
N_PROJ = B * S_MODAL                          # 16 projected modal rows
SE_ROWS = 8                                   # start/end block padded to 8 sublanes
K_OP = HIDDEN                                 # operand rows of the placement matmul
OP_PAD_ROWS = K_OP - N_PROJ - SE_ROWS         # 8 zero rows to reach K_OP
assert 2 * B <= SE_ROWS and OP_PAD_ROWS >= 0, "config no longer fits the packed layout"

# params-pack row offsets (blocks start on sublane-aligned rows)
R_S = 0                                       # placement matrix S         (M_PAD, H)
R_W = R_S + M_PAD                             # W_proj                     (Dm, H)
R_WORD = R_W + MODAL_HIDDEN                   # word embeddings            (VOCAB, H)
R_ADD_MID = R_WORD + VOCAB                    # pos[1:1+Sm]+type+b_proj xB (N_PROJ, H)
R_ADD_SE = R_ADD_MID + N_PROJ                 # pos[0]/pos[SEQ-1]+type     (SE_ROWS, H)
R_GB = R_ADD_SE + SE_ROWS                     # gamma row, beta row        (2, H)
PACK_ROWS = ((R_GB + 2 + 7) // 8) * 8         # pad pack rows to multiple of 8


# ---- Pallas kernel ------------------------------------------------------------
def modal_embeddings_kernel(start_ref, end_ref, modal_ref, pack_ref, out_ref):
    # Static slices of the params pack (zero-cost ref views -> single loads).
    s_mat   = pack_ref[R_S:R_S + M_PAD, :]                 # (M_PAD, K_OP) placement
    w_proj  = pack_ref[R_W:R_W + MODAL_HIDDEN, :]          # (Dm, H)
    word    = pack_ref[R_WORD:R_WORD + VOCAB, :]           # (VOCAB, H)
    add_mid = pack_ref[R_ADD_MID:R_ADD_MID + N_PROJ, :]    # (N_PROJ, H)
    add_se  = pack_ref[R_ADD_SE:R_ADD_SE + SE_ROWS, :]     # (SE_ROWS, H)
    gb      = pack_ref[R_GB:R_GB + 2, :]                   # (2, H): gamma, beta

    # ---- start/end word-embedding gather, in-kernel -------------------------
    # One-hot rows [start_0..start_{B-1}, end_0..end_{B-1}] from the SMEM-prefetched
    # token ids via VPU iota/compares (no dynamic VMEM indexing), then one tiny MXU
    # matmul against the word-embedding table.
    row_iota = jax.lax.broadcasted_iota(jnp.int32, (SE_ROWS, VOCAB), 0)
    lane_iota = jax.lax.broadcasted_iota(jnp.int32, (SE_ROWS, VOCAB), 1)
    onehot = jnp.zeros((SE_ROWS, VOCAB), jnp.float32)
    for b in range(B):
        onehot = onehot + jnp.where(
            (row_iota == b) & (lane_iota == start_ref[b]), 1.0, 0.0)
        onehot = onehot + jnp.where(
            (row_iota == B + b) & (lane_iota == end_ref[b]), 1.0, 0.0)
    se = jnp.dot(onehot, word, preferred_element_type=jnp.float32) + add_se   # (SE_ROWS, H)

    # ---- modal projection: every batch's tokens in ONE MXU pass --------------
    proj = jnp.dot(modal_ref[...], w_proj,
                   preferred_element_type=jnp.float32) + add_mid              # (N_PROJ, H)

    # ---- assemble [start | proj | end] per batch, in final row order ---------
    # A constant 0/1 placement matmul replaces unaligned sublane scatters/concats.
    parts = [proj, se]
    if OP_PAD_ROWS:
        parts.append(jnp.zeros((OP_PAD_ROWS, HIDDEN), jnp.float32))
    operand = jnp.concatenate(parts, axis=0)                                  # (K_OP, H)
    emb = jnp.dot(s_mat, operand, preferred_element_type=jnp.float32)         # (M_PAD, H)

    # ---- LayerNorm over H (f32 math; centered two-pass variance) -------------
    mean = jnp.mean(emb, axis=-1, keepdims=True)
    cent = emb - mean
    var = jnp.mean(cent * cent, axis=-1, keepdims=True)
    y = cent * jax.lax.rsqrt(var + LN_EPS)
    y = y * gb[0:1, :] + gb[1:2, :]

    # dropout: inference mode -> identity.
    # TODO(synk): training-mode dropout would use pltpu.prng_seed / prng_random_bits.
    out_ref[...] = y.astype(out_ref.dtype)


# ---- init-time constant pack (hoistable: depends only on parameters) ----------
def build_params_pack(w_proj, b_proj, word_emb, pos_emb_table, type_emb_table,
                      gamma, beta):
    H = HIDDEN
    pos = pos_emb_table[:SEQ]                      # (SEQ, H): position_ids = arange
    type0 = type_emb_table[0]                      # (H,)    : token_type_ids = zeros

    # placement matrix: emb_rows = S @ [proj rows; start/end rows; zero pad]
    s_mat = np.zeros((M_PAD, HIDDEN), np.float32)
    for b in range(B):
        base = b * SEQ
        s_mat[base, N_PROJ + b] = 1.0                        # start-token row
        for j in range(S_MODAL):
            s_mat[base + 1 + j, b * S_MODAL + j] = 1.0       # projected modal rows
        s_mat[base + SEQ - 1, N_PROJ + B + b] = 1.0          # end-token row

    add_mid = jnp.tile(pos[1:1 + S_MODAL] + type0[None, :] + b_proj[None, :], (B, 1))
    add_se = jnp.concatenate([
        jnp.broadcast_to(pos[0] + type0, (B, H)),
        jnp.broadcast_to(pos[SEQ - 1] + type0, (B, H)),
        jnp.zeros((SE_ROWS - 2 * B, H), jnp.float32)], axis=0)

    pack = jnp.concatenate([
        jnp.asarray(s_mat), w_proj, word_emb, add_mid, add_se,
        gamma[None, :], beta[None, :],
        jnp.zeros((PACK_ROWS - (R_GB + 2), H), jnp.float32)], axis=0)
    assert pack.shape == (PACK_ROWS, HIDDEN)
    return pack


# ---- wrapper: per-call path is just the pallas_call + output reshape ----------
def modal_embeddings_pallas(modal_tokens, start_token, end_token, params_pack):
    """modal_tokens: (B, S_MODAL, MODAL_HIDDEN) encoder output; tokens: (B,) int32."""
    Bq, Sm, Dm = modal_tokens.shape
    modal2d = modal_tokens.reshape(Bq * Sm, Dm)    # collapse leading dims (cheap)

    grid_spec = pltpu.PrefetchScalarGridSpec(
        num_scalar_prefetch=2,                     # start/end token ids -> SMEM
        grid=(1,),                                 # whole problem is a few KB: one step
        in_specs=[
            pl.BlockSpec((Bq * Sm, Dm), lambda i, s, e: (0, 0)),        # encoder tokens
            pl.BlockSpec((PACK_ROWS, HIDDEN), lambda i, s, e: (0, 0)),  # constant pack
        ],
        out_specs=pl.BlockSpec((M_PAD, HIDDEN), lambda i, s, e: (0, 0)),
    )

    cost = pl.CostEstimate(
        flops=2 * (SE_ROWS * VOCAB * HIDDEN
                   + N_PROJ * Dm * HIDDEN
                   + M_PAD * K_OP * HIDDEN) + 10 * M_PAD * HIDDEN,
        transcendentals=M_PAD,                     # one rsqrt per row
        bytes_accessed=4 * (Bq * Sm * Dm + PACK_ROWS * HIDDEN
                            + M_PAD * HIDDEN + 2 * 2 * Bq),
    )

    out2d = pl.pallas_call(
        modal_embeddings_kernel,
        out_shape=jax.ShapeDtypeStruct((M_PAD, HIDDEN), jnp.float32),
        grid_spec=grid_spec,
        compiler_params=pltpu.CompilerParams(dimension_semantics=("arbitrary",)),
        cost_estimate=cost,
    )(start_token, end_token, modal2d, params_pack)

    # drop the sublane-padding rows and restore (B, SEQ, H)
    return out2d[:Bq * SEQ].reshape(Bq, SEQ, HIDDEN)


# ---- pure-JAX reference (mirrors the PyTorch module's forward) ----------------
def modal_embeddings_ref(modal_tokens, w_proj, b_proj, start_emb, end_emb,
                         pos_emb, type_emb_row0, gamma, beta):
    proj = modal_tokens @ w_proj + b_proj                              # (B, Sm, H)
    tok = jnp.concatenate([start_emb[:, None, :], proj, end_emb[:, None, :]], axis=1)
    emb = tok + pos_emb[None, : tok.shape[1], :] + type_emb_row0[None, None, :]
    mean = jnp.mean(emb, axis=-1, keepdims=True)
    var = jnp.mean((emb - mean) ** 2, axis=-1, keepdims=True)
    return (emb - mean) * jax.lax.rsqrt(var + LN_EPS) * gamma + beta


if __name__ == "__main__":
    key = jax.random.PRNGKey(0)
    keys = jax.random.split(key, 8)

    # deterministic synthetic parameters (shapes from the module's __init__)
    input_modal = jax.random.normal(keys[0], (B, MODAL_HIDDEN, IMG, IMG), jnp.float32)
    w_proj = jax.random.normal(keys[1], (MODAL_HIDDEN, HIDDEN), jnp.float32) * 0.05
    b_proj = jax.random.normal(keys[2], (HIDDEN,), jnp.float32) * 0.01
    word_emb = jax.random.normal(keys[3], (VOCAB, HIDDEN), jnp.float32) * 0.05
    pos_emb_table = jax.random.normal(keys[4], (MAX_POS, HIDDEN), jnp.float32) * 0.05
    type_emb_table = jax.random.normal(keys[5], (TYPE_VOCAB, HIDDEN), jnp.float32) * 0.05
    ln_gamma = jnp.ones((HIDDEN,), jnp.float32)
    ln_beta = jnp.zeros((HIDDEN,), jnp.float32)

    start_token = jnp.array([1, 1], dtype=jnp.int32)   # e.g. [CLS]
    end_token = jnp.array([2, 2], dtype=jnp.int32)     # e.g. [SEP]

    # synthetic encoder (glue): mean-pool NCHW spatial positions into S_MODAL tokens.
    # TODO(synk): the real module's `encoder` is an arbitrary sub-module (e.g. an image
    # CNN) and therefore stays outside the kernel.
    spatial = input_modal.reshape(B, MODAL_HIDDEN, S_MODAL, (IMG * IMG) // S_MODAL)
    modal_tokens = jnp.mean(spatial, axis=-1).transpose(0, 2, 1)       # (B, S_MODAL, C)

    # init-time only: constant pack of parameters (hoisted out of the per-call path)
    params_pack = build_params_pack(w_proj, b_proj, word_emb, pos_emb_table,
                                    type_emb_table, ln_gamma, ln_beta)

    out = modal_embeddings_pallas(modal_tokens, start_token, end_token, params_pack)
    out = jax.block_until_ready(out)

    # reference (uses plain gathers; only for checking)
    start_emb = word_emb[start_token]
    end_emb = word_emb[end_token]
    ref = modal_embeddings_ref(modal_tokens, w_proj, b_proj, start_emb, end_emb,
                               pos_emb_table[:SEQ], type_emb_table[0],
                               ln_gamma, ln_beta)

    assert out.shape == (B, SEQ, HIDDEN)
    assert jnp.allclose(out, ref, atol=1e-4, rtol=1e-4)
    print("KERNEL_OK")
</pallas_src>

<mosaic_0001>
module attributes {stable_mosaic.version = 11 : i64} {
  func.func @modal_embeddings_kernel(%arg0: i32, %arg1: memref<2xi32, #tpu.memory_space<smem>>, %arg2: memref<2xi32, #tpu.memory_space<smem>>, %arg3: memref<16x32xf32, #tpu.memory_space<vmem>>, %arg4: memref<152x32xf32, #tpu.memory_space<vmem>>, %arg5: memref<24x32xf32, #tpu.memory_space<vmem>>) attributes {dimension_semantics = [#tpu.dimension_semantics<arbitrary>], iteration_bounds = array<i64: 1>, scalar_prefetch = 2 : i64, scratch_operands = 0 : i64, tpu.core_type = #tpu.core_type<tc>, window_params = [{pipeline_mode = #tpu.pipeline_mode<synchronous>, transform_indices = @transform_0, window_bounds = array<i64: 16, 32>}, {pipeline_mode = #tpu.pipeline_mode<synchronous>, transform_indices = @transform_1, window_bounds = array<i64: 152, 32>}, {pipeline_mode = #tpu.pipeline_mode<synchronous>, transform_indices = @transform_2, window_bounds = array<i64: 24, 32>}]} {
    %c0 = arith.constant 0 : index
    %c0_0 = arith.constant 0 : index
    %0 = vector.load %arg4[%c0, %c0_0] : memref<152x32xf32, #tpu.memory_space<vmem>>, vector<24x32xf32>
    %c24 = arith.constant 24 : index
    %c0_1 = arith.constant 0 : index
    %1 = vector.load %arg4[%c24, %c0_1] : memref<152x32xf32, #tpu.memory_space<vmem>>, vector<32x32xf32>
    %c56 = arith.constant 56 : index
    %c0_2 = arith.constant 0 : index
    %2 = vector.load %arg4[%c56, %c0_2] : memref<152x32xf32, #tpu.memory_space<vmem>>, vector<64x32xf32>
    %c120 = arith.constant 120 : index
    %c0_3 = arith.constant 0 : index
    %3 = vector.load %arg4[%c120, %c0_3] : memref<152x32xf32, #tpu.memory_space<vmem>>, vector<16x32xf32>
    %c136 = arith.constant 136 : index
    %c0_4 = arith.constant 0 : index
    %4 = vector.load %arg4[%c136, %c0_4] : memref<152x32xf32, #tpu.memory_space<vmem>>, vector<8x32xf32>
    %c144 = arith.constant 144 : index
    %c0_5 = arith.constant 0 : index
    %5 = vector.load %arg4[%c144, %c0_5] : memref<152x32xf32, #tpu.memory_space<vmem>>, vector<2x32xf32>
    %6 = tpu.iota {dimensions = array<i32: 0>} : vector<8x64xi32>
    %7 = tpu.iota {dimensions = array<i32: 1>} : vector<8x64xi32>
    %cst = arith.constant 0.000000e+00 : f32
    %8 = vector.broadcast %cst : f32 to vector<8x64xf32>
    %c0_i32 = arith.constant 0 : i32
    %9 = vector.broadcast %c0_i32 : i32 to vector<8x64xi32>
    %10 = arith.cmpi eq, %6, %9 : vector<8x64xi32>
    %c0_6 = arith.constant 0 : index
    %11 = memref.load %arg1[%c0_6] : memref<2xi32, #tpu.memory_space<smem>>
    %12 = vector.broadcast %11 : i32 to vector<8x64xi32>
    %13 = arith.cmpi eq, %7, %12 : vector<8x64xi32>
    %14 = arith.andi %10, %13 : vector<8x64xi1>
    %cst_7 = arith.constant 1.000000e+00 : f32
    %cst_8 = arith.constant 0.000000e+00 : f32
    %15 = vector.broadcast %cst_7 : f32 to vector<8x64xf32>
    %16 = vector.broadcast %cst_8 : f32 to vector<8x64xf32>
    %17 = arith.select %14, %15, %16 : vector<8x64xi1>, vector<8x64xf32>
    %18 = arith.addf %8, %17 : vector<8x64xf32>
    %c2_i32 = arith.constant 2 : i32
    %19 = vector.broadcast %c2_i32 : i32 to vector<8x64xi32>
    %20 = arith.cmpi eq, %6, %19 : vector<8x64xi32>
    %c0_9 = arith.constant 0 : index
    %21 = memref.load %arg2[%c0_9] : memref<2xi32, #tpu.memory_space<smem>>
    %22 = vector.broadcast %21 : i32 to vector<8x64xi32>
    %23 = arith.cmpi eq, %7, %22 : vector<8x64xi32>
    %24 = arith.andi %20, %23 : vector<8x64xi1>
    %cst_10 = arith.constant 1.000000e+00 : f32
    %cst_11 = arith.constant 0.000000e+00 : f32
    %25 = vector.broadcast %cst_10 : f32 to vector<8x64xf32>
    %26 = vector.broadcast %cst_11 : f32 to vector<8x64xf32>
    %27 = arith.select %24, %25, %26 : vector<8x64xi1>, vector<8x64xf32>
    %28 = arith.addf %18, %27 : vector<8x64xf32>
    %c1_i32 = arith.constant 1 : i32
    %29 = vector.broadcast %c1_i32 : i32 to vector<8x64xi32>
    %30 = arith.cmpi eq, %6, %29 : vector<8x64xi32>
    %c1 = arith.constant 1 : index
    %31 = memref.load %arg1[%c1] : memref<2xi32, #tpu.memory_space<smem>>
    %32 = vector.broadcast %31 : i32 to vector<8x64xi32>
    %33 = arith.cmpi eq, %7, %32 : vector<8x64xi32>
    %34 = arith.andi %30, %33 : vector<8x64xi1>
    %cst_12 = arith.constant 1.000000e+00 : f32
    %cst_13 = arith.constant 0.000000e+00 : f32
    %35 = vector.broadcast %cst_12 : f32 to vector<8x64xf32>
    %36 = vector.broadcast %cst_13 : f32 to vector<8x64xf32>
    %37 = arith.select %34, %35, %36 : vector<8x64xi1>, vector<8x64xf32>
    %38 = arith.addf %28, %37 : vector<8x64xf32>
    %c3_i32 = arith.constant 3 : i32
    %39 = vector.broadcast %c3_i32 : i32 to vector<8x64xi32>
    %40 = arith.cmpi eq, %6, %39 : vector<8x64xi32>
    %c1_14 = arith.constant 1 : index
    %41 = memref.load %arg2[%c1_14] : memref<2xi32, #tpu.memory_space<smem>>
    %42 = vector.broadcast %41 : i32 to vector<8x64xi32>
    %43 = arith.cmpi eq, %7, %42 : vector<8x64xi32>
    %44 = arith.andi %40, %43 : vector<8x64xi1>
    %cst_15 = arith.constant 1.000000e+00 : f32
    %cst_16 = arith.constant 0.000000e+00 : f32
    %45 = vector.broadcast %cst_15 : f32 to vector<8x64xf32>
    %46 = vector.broadcast %cst_16 : f32 to vector<8x64xf32>
    %47 = arith.select %44, %45, %46 : vector<8x64xi1>, vector<8x64xf32>
    %48 = arith.addf %38, %47 : vector<8x64xf32>
    %cst_17 = arith.constant dense<0.000000e+00> : vector<8x32xf32>
    %49 = tpu.matmul %48, %2, %cst_17 {dimension_numbers = #tpu.dot_dimension_numbers<[1], [0], [0], [1], [0, 0, 1, 1], [], []>} : vector<8x64xf32>, vector<64x32xf32>, vector<8x32xf32> -> vector<8x32xf32>
    %50 = arith.addf %49, %4 : vector<8x32xf32>
    %c0_18 = arith.constant 0 : index
    %c0_19 = arith.constant 0 : index
    %51 = vector.load %arg3[%c0_18, %c0_19] : memref<16x32xf32, #tpu.memory_space<vmem>>, vector<16x32xf32>
    %cst_20 = arith.constant dense<0.000000e+00> : vector<16x32xf32>
    %52 = tpu.matmul %51, %1, %cst_20 {dimension_numbers = #tpu.dot_dimension_numbers<[1], [0], [0], [1], [0, 0, 1, 1], [], []>} : vector<16x32xf32>, vector<32x32xf32>, vector<16x32xf32> -> vector<16x32xf32>
    %53 = arith.addf %52, %3 : vector<16x32xf32>
    %cst_21 = arith.constant 0.000000e+00 : f32
    %54 = vector.broadcast %cst_21 : f32 to vector<8x32xf32>
    %55 = tpu.concatenate %53, %50, %54 in 0 : vector<16x32xf32>, vector<8x32xf32>, vector<8x32xf32> -> vector<32x32xf32>
    %cst_22 = arith.constant dense<0.000000e+00> : vector<24x32xf32>
    %56 = tpu.matmul %0, %55, %cst_22 {dimension_numbers = #tpu.dot_dimension_numbers<[1], [0], [0], [1], [0, 0, 1, 1], [], []>} : vector<24x32xf32>, vector<32x32xf32>, vector<24x32xf32> -> vector<24x32xf32>
    %cst_23 = arith.constant dense<0.000000e+00> : vector<24xf32>
    %57 = vector.multi_reduction <add>, %56, %cst_23 [1] : vector<24x32xf32> to vector<24xf32>
    %58 = vector.shape_cast %57 : vector<24xf32> to vector<24x1xf32>
    %cst_24 = arith.constant 3.200000e+01 : f32
    %59 = vector.broadcast %cst_24 : f32 to vector<24x1xf32>
    %60 = arith.divf %58, %59 : vector<24x1xf32>
    %61 = vector.broadcast %60 : vector<24x1xf32> to vector<24x32xf32>
    %62 = arith.subf %56, %61 : vector<24x32xf32>
    %63 = arith.mulf %62, %62 : vector<24x32xf32>
    %cst_25 = arith.constant dense<0.000000e+00> : vector<24xf32>
    %64 = vector.multi_reduction <add>, %63, %cst_25 [1] : vector<24x32xf32> to vector<24xf32>
    %65 = vector.shape_cast %64 : vector<24xf32> to vector<24x1xf32>
    %cst_26 = arith.constant 3.200000e+01 : f32
    %66 = vector.broadcast %cst_26 : f32 to vector<24x1xf32>
    %67 = arith.divf %65, %66 : vector<24x1xf32>
    %cst_27 = arith.constant 9.99999996E-13 : f32
    %68 = vector.broadcast %cst_27 : f32 to vector<24x1xf32>
    %69 = arith.addf %67, %68 : vector<24x1xf32>
    %70 = math.rsqrt %69 : vector<24x1xf32>
    %71 = vector.broadcast %70 : vector<24x1xf32> to vector<24x32xf32>
    %72 = arith.mulf %62, %71 : vector<24x32xf32>
    %73 = vector.extract_strided_slice %5 {offsets = [0, 0], sizes = [1, 32], strides = [1, 1]} : vector<2x32xf32> to vector<1x32xf32>
    %74 = vector.broadcast %73 : vector<1x32xf32> to vector<24x32xf32>
    %75 = arith.mulf %72, %74 : vector<24x32xf32>
    %76 = vector.extract_strided_slice %5 {offsets = [1, 0], sizes = [1, 32], strides = [1, 1]} : vector<2x32xf32> to vector<1x32xf32>
    %77 = vector.broadcast %76 : vector<1x32xf32> to vector<24x32xf32>
    %78 = arith.addf %75, %77 : vector<24x32xf32>
    %c0_28 = arith.constant 0 : index
    %c0_29 = arith.constant 0 : index
    %79 = vector.load %arg5[%c0_28, %c0_29] : memref<24x32xf32, #tpu.memory_space<vmem>>, vector<24x32xf32>
    tpu.vector_store %arg5[%c0_28, %c0_29], %78 {strides = array<i32>} : memref<24x32xf32, #tpu.memory_space<vmem>>, vector<24x32xf32>,
    return
  }
  func.func @transform_0(%arg0: i32, %arg1: memref<2xi32, #tpu.memory_space<smem>>, %arg2: memref<2xi32, #tpu.memory_space<smem>>) -> (i32, i32) {
    %c0_i32 = arith.constant 0 : i32
    %c0_i32_0 = arith.constant 0 : i32
    %c0_i32_1 = arith.constant 0 : i32
    return %c0_i32, %c0_i32_0 : i32, i32
  }
  func.func @transform_1(%arg0: i32, %arg1: memref<2xi32, #tpu.memory_space<smem>>, %arg2: memref<2xi32, #tpu.memory_space<smem>>) -> (i32, i32) {
    %c0_i32 = arith.constant 0 : i32
    %c0_i32_0 = arith.constant 0 : i32
    %c0_i32_1 = arith.constant 0 : i32
    return %c0_i32, %c0_i32_0 : i32, i32
  }
  func.func @transform_2(%arg0: i32, %arg1: memref<2xi32, #tpu.memory_space<smem>>, %arg2: memref<2xi32, #tpu.memory_space<smem>>) -> (i32, i32) {
    %c0_i32 = arith.constant 0 : i32
    %c0_i32_0 = arith.constant 0 : i32
    %c0_i32_1 = arith.constant 0 : i32
    return %c0_i32, %c0_i32_0 : i32, i32
  }
}

</mosaic_0001>

<llo_original>
// kernel: tpu_custom_call.1
$region0: #{tpu_custom_call.1}
  #allocation0 [shape = 'u32[]', space=smem, size = 0x4, offset = 0x4, fixed_abs, tag = 'smem constant byte address 0x4 - core index']
  #allocation1 [shape = 'u32[144,128]{1,0:T(1,128)}', space=vmem, size = 0x12000, scoped, tag = 'internal scratch']
  #allocation2 [shape = 's32[1]{0}', space=sflag, size = 0x4, scoped, tag = 'scoped memory for tpu_custom_call.1']
  #allocation3 [shape = 'u8[512]{0}', space=smem, size = 0x200, scoped, tag = 'prefetched SMEM operand 0']
  #allocation4 [shape = 'u8[512]{0}', space=smem, size = 0x200, scoped, tag = 'prefetched SMEM operand 1']
  %s0 = inlined_call_operand.vmem [shape: s32[2], index: 0, kind: input, shape index: {}]
  %s1 = inlined_call_operand.vmem [shape: s32[2], index: 1, kind: input, shape index: {}]
  %s2 = inlined_call_operand.vmem [shape: f32[16,32], index: 2, kind: input, shape index: {}]
  %s3 = inlined_call_operand.vmem [shape: f32[152,32], index: 3, kind: input, shape index: {}]
  %s4 = inlined_call_operand.hbm [shape: f32[24,32], index: 4, kind: output, shape index: {}]
  %s5 = sld [smem:[#allocation0]]
  $region18: #{tpu_custom_call.1} parent=0
    _
  %s7 = ssub.s32 1, %s5
  %s8 = scalar_select 0, %s7, %s5
  %s9 = sshll.u32 %s0, 4
  %s10 = int_to_ptr.vmem [resolvable:$true] %s9
  %12 = dma.vmem_to_smem %s10, 16, [#allocation3], [#allocation2]
  %s13 = sshll.u32 %s1, 4
  %s14 = int_to_ptr.vmem [resolvable:$true] %s13
  %16 = dma.vmem_to_smem %s14, 16, [#allocation4], [#allocation2]
  %17 = dma.done [#allocation2], 32
  %18 = sfence
  $region1: #{tpu_custom_call.1} parent=0
    #allocation5 [shape = 'u8[12288]{0}', space=vmem, size = 0x3000, scoped, tag = 'output window, operand 0, single buffered']
    #allocation6 [shape = 's32[1]{0}', space=sflag, size = 0x4, scoped, tag = 'scoped memory for tpu_custom_call.1']
    %19 = vsyncpa [#allocation6], 0
    // Predicated region
    $region2: #{tpu_custom_call.1} parent=1 // pred_check
      _
    $region3: #{tpu_custom_call.1} parent=1 // pred_check_branch
      %21 = sbr.rel (0) target = $region5
    $region4: #{tpu_custom_call.1} parent=1 // pred_region
      _
    $region5: #{tpu_custom_call.1} parent=1 // pred_fallthru
      _
    // Predicated region
    $region6: #{tpu_custom_call.1} parent=1 // pred_check
      _
    $region7: #{tpu_custom_call.1} parent=1 // pred_check_branch
      %23 = sbr.rel (0) target = $region9
    $region8: #{tpu_custom_call.1} parent=1 // pred_region
      _
    $region9: #{tpu_custom_call.1} parent=1 // pred_fallthru
      _
    %v24 = vld [vmem:[%s3] sm:$0xff]
    %v25 = vld [vmem:[%s3 + $0x8] sm:$0xff]
    %v26 = vld [vmem:[%s3 + $0x10] sm:$0xff]
    %v27 = vld [vmem:[%s3 + $0x18] sm:$0xff]
    %v28 = vld [vmem:[%s3 + $0x20] sm:$0xff]
    %v29 = vld [vmem:[%s3 + $0x28] sm:$0xff]
    %v30 = vld [vmem:[%s3 + $0x30] sm:$0xff]
    %v31 = vld [vmem:[%s3 + $0x38] sm:$0xff]
    %v32 = vld [vmem:[%s3 + $0x40] sm:$0xff]
    %v33 = vld [vmem:[%s3 + $0x48] sm:$0xff]
    %v34 = vld [vmem:[%s3 + $0x50] sm:$0xff]
    %v35 = vld [vmem:[%s3 + $0x58] sm:$0xff]
    %v36 = vld [vmem:[%s3 + $0x60] sm:$0xff]
    %v37 = vld [vmem:[%s3 + $0x68] sm:$0xff]
    %v38 = vld [vmem:[%s3 + $0x70] sm:$0xff]
    %v39 = vld [vmem:[%s3 + $0x78] sm:$0xff]
    %v40 = vld [vmem:[%s3 + $0x80] sm:$0xff]
    %v41 = vld [vmem:[%s3 + $0x88] sm:$0xff]
    %v42 = vld [vmem:[%s3 + $0x90] sm:$0x3]
    %v43 = vlaneseq
    %v44 = vshrl.u32 %v43, 7
    %v45 = vlaneseq
    %v46 = vand.u32 %v45, 127
    %vm47 = vcmp.eq.s32.totalorder %v44, 0
    %s48 = sld [smem:[#allocation3]]
    %v49 = vstv %s48
    %vm50 = vcmp.eq.s32.totalorder %v46, %v49
    %vm51 = vmand %vm47, %vm50
    %v52 = vsel %vm51, 1.0, 0.0
    %v53 = vadd.f32 %v52, 0.0
    %vm54 = vcmp.eq.s32.totalorder %v44, 2
    %s55 = sld [smem:[#allocation4]]
    %v56 = vstv %s55
    %vm57 = vcmp.eq.s32.totalorder %v46, %v56
    %vm58 = vmand %vm54, %vm57
    %v59 = vsel %vm58, 1.0, 0.0
    %v60 = vadd.f32 %v53, %v59
    %vm61 = vcmp.eq.s32.totalorder %v44, 1
    %s62 = sld [smem:[#allocation3 + $0x1]]
    %v63 = vstv %s62
    %vm64 = vcmp.eq.s32.totalorder %v46, %v63
    %vm65 = vmand %vm61, %vm64
    %v66 = vsel %vm65, 1.0, 0.0
    %v67 = vadd.f32 %v60, %v66
    %vm68 = vcmp.eq.s32.totalorder %v44, 3
    %s69 = sld [smem:[#allocation4 + $0x1]]
    %v70 = vstv %s69
    %vm71 = vcmp.eq.s32.totalorder %v46, %v70
    %vm72 = vmand %vm68, %vm71
    %v73 = vsel %vm72, 1.0, 0.0
    %v74 = vadd.f32 %v67, %v73
    %vm75 = vcmask 523264
    %v77 = vsel %vm75, %v74, 0
    %79 = vmatprep.subr.mxu0 0.0
    %80 = vmatpush1.msra.mxu0 %v31
    %81 = vmatprep.subr.mxu0 0.0
    %82 = vmatpush1.msra.mxu0 %v32
    %83 = vmatprep.subr.mxu0 0.0
    %84 = vmatpush1.msra.mxu0 %v33
    %85 = vmatprep.subr.mxu0 0.0
    %86 = vmatpush1.msra.mxu0 %v34
    %87 = vmatprep.subr.mxu0 0.0
    %88 = vmatpush1.msra.mxu0 %v35
    %89 = vmatprep.subr.mxu0 0.0
    %90 = vmatpush1.msra.mxu0 %v36
    %91 = vmatprep.subr.mxu0 0.0
    %92 = vmatpush1.msra.mxu0 %v37
    %93 = vmatprep.subr.mxu0 0.0
    %94 = vmatpush1.msra.mxu0 %v38
    %95 = vmatprep.subr.mxu0 0.0
    %96 = vmatpush1.msra.mxu0 0.0
    %97 = vmatprep.subr.mxu0 0.0
    %98 = vmatpush1.msra.mxu0 0.0
    %99 = vmatprep.subr.mxu0 0.0
    %100 = vmatpush1.msra.mxu0 0.0
    %101 = vmatprep.subr.mxu0 0.0
    %102 = vmatpush1.msra.mxu0 0.0
    %103 = vmatprep.subr.mxu0 0.0
    %104 = vmatpush1.msra.mxu0 0.0
    %105 = vmatprep.subr.mxu0 0.0
    %106 = vmatpush1.msra.mxu0 0.0
    %107 = vmatprep.subr.mxu0 0.0
    %108 = vmatpush1.msra.mxu0 0.0
    %109 = vmatprep.subr.mxu0 0.0
    %110 = vmatpush1.msra.mxu0 0.0
    %111 = vmatprep.subr.mxu0 0.0
    %112 = vmatpush1.msra.mxu0 0.0
    %113 = vmatprep.subr.mxu0 0.0
    %114 = vmatpush1.msra.mxu0 0.0
    %115 = vmatprep.subr.mxu0 0.0
    %116 = vmatpush1.msra.mxu0 0.0
    %117 = vmatprep.subr.mxu0 0.0
    %118 = vmatpush1.msra.mxu0 0.0
    %119 = vmatprep.subr.mxu0 0.0
    %120 = vmatpush1.msra.mxu0 0.0
    %121 = vmatprep.subr.mxu0 0.0
    %122 = vmatpush1.msra.mxu0 0.0
    %123 = vmatprep.subr.mxu0 0.0
    %124 = vmatpush1.msra.mxu0 0.0
    %125 = vmatprep.subr.mxu0 0.0
    %126 = vmatpush1.msra.mxu0 0.0
    %127 = vmatprep.subr.mxu0 0.0
    %128 = vmatpush1.msra.mxu0 0.0
    %129 = vmatprep.subr.mxu0 0.0
    %130 = vmatpush1.msra.mxu0 0.0
    %131 = vmatprep.subr.mxu0 0.0
    %132 = vmatpush1.msra.mxu0 0.0
    %133 = vmatprep.subr.mxu0 0.0
    %134 = vmatpush1.msra.mxu0 0.0
    %135 = vmatprep.subr.mxu0 0.0
    %136 = vmatpush1.msra.mxu0 0.0
    %137 = vmatprep.subr.mxu0 0.0
    %138 = vmatpush1.msra.mxu0 0.0
    %139 = vmatprep.subr.mxu0 0.0
    %140 = vmatpush1.msra.mxu0 0.0
    %141 = vmatprep.subr.mxu0 0.0
    %142 = vmatpush1.msra.mxu0 0.0
    %143 = vmatprep.mubr.f32.mxu0 0.0
    %144 = vmatmul.mubr.f32.gmra.mrb[0].mxu0 %v77
    %v145 = vpop.f32.mrb[0].mxu0
    %v146 = vadd.f32 %v41, %v145
    %v147 = vpop.f32.mrb[0].mxu0
    %148 = vdwg.mxu0
    %v149 = vld [vmem:[%s2] sm:$0xff]
    %v150 = vld [vmem:[%s2 + $0x8] sm:$0xff]
    %vm151 = vcmask 261120
    %v153 = vsel %vm151, %v149, 0
    %v156 = vsel %vm151, %v150, 0
    %158 = vmatprep.subr.mxu0 0.0
    %159 = vmatpush1.msra.mxu0 %v27
    %160 = vmatprep.subr.mxu0 0.0
    %161 = vmatpush1.msra.mxu0 %v28
    %162 = vmatprep.subr.mxu0 0.0
    %163 = vmatpush1.msra.mxu0 %v29
    %164 = vmatprep.subr.mxu0 0.0
    %165 = vmatpush1.msra.mxu0 %v30
    %166 = vmatprep.subr.mxu0 0.0
    %167 = vmatpush1.msra.mxu0 0.0
    %168 = vmatprep.subr.mxu0 0.0
    %169 = vmatpush1.msra.mxu0 0.0
    %170 = vmatprep.subr.mxu0 0.0
    %171 = vmatpush1.msra.mxu0 0.0
    %172 = vmatprep.subr.mxu0 0.0
    %173 = vmatpush1.msra.mxu0 0.0
    %174 = vmatprep.subr.mxu0 0.0
    %175 = vmatpush1.msra.mxu0 0.0
    %176 = vmatprep.subr.mxu0 0.0
    %177 = vmatpush1.msra.mxu0 0.0
    %178 = vmatprep.subr.mxu0 0.0
    %179 = vmatpush1.msra.mxu0 0.0
    %180 = vmatprep.subr.mxu0 0.0
    %181 = vmatpush1.msra.mxu0 0.0
    %182 = vmatprep.subr.mxu0 0.0
    %183 = vmatpush1.msra.mxu0 0.0
    %184 = vmatprep.subr.mxu0 0.0
    %185 = vmatpush1.msra.mxu0 0.0
    %186 = vmatprep.subr.mxu0 0.0
    %187 = vmatpush1.msra.mxu0 0.0
    %188 = vmatprep.subr.mxu0 0.0
    %189 = vmatpush1.msra.mxu0 0.0
    %190 = vmatprep.subr.mxu0 0.0
    %191 = vmatpush1.msra.mxu0 0.0
    %192 = vmatprep.subr.mxu0 0.0
    %193 = vmatpush1.msra.mxu0 0.0
    %194 = vmatprep.subr.mxu0 0.0
    %195 = vmatpush1.msra.mxu0 0.0
    %196 = vmatprep.subr.mxu0 0.0
    %197 = vmatpush1.msra.mxu0 0.0
    %198 = vmatprep.subr.mxu0 0.0
    %199 = vmatpush1.msra.mxu0 0.0
    %200 = vmatprep.subr.mxu0 0.0
    %201 = vmatpush1.msra.mxu0 0.0
    %202 = vmatprep.subr.mxu0 0.0
    %203 = vmatpush1.msra.mxu0 0.0
    %204 = vmatprep.subr.mxu0 0.0
    %205 = vmatpush1.msra.mxu0 0.0
    %206 = vmatprep.subr.mxu0 0.0
    %207 = vmatpush1.msra.mxu0 0.0
    %208 = vmatprep.subr.mxu0 0.0
    %209 = vmatpush1.msra.mxu0 0.0
    %210 = vmatprep.subr.mxu0 0.0
    %211 = vmatpush1.msra.mxu0 0.0
    %212 = vmatprep.subr.mxu0 0.0
    %213 = vmatpush1.msra.mxu0 0.0
    %214 = vmatprep.subr.mxu0 0.0
    %215 = vmatpush1.msra.mxu0 0.0
    %216 = vmatprep.subr.mxu0 0.0
    %217 = vmatpush1.msra.mxu0 0.0
    %218 = vmatprep.subr.mxu0 0.0
    %219 = vmatpush1.msra.mxu0 0.0
    %220 = vmatprep.subr.mxu0 0.0
    %221 = vmatpush1.msra.mxu0 0.0
    %222 = vmatprep.mubr.f32.mxu0 0.0
    %223 = vmatmul.mubr.f32.gmra.mrb[0].mxu0 %v153
    %v224 = vpop.f32.mrb[0].mxu0
    %v225 = vadd.f32 %v39, %v224
    %v226 = vpop.f32.mrb[0].mxu0
    %227 = vmatprep.mubr.f32.mxu0 0.0
    %228 = vmatmul.mubr.f32.gmra.mrb[0].mxu0 %v156
    %v229 = vpop.f32.mrb[0].mxu0
    %v230 = vadd.f32 %v40, %v229
    %v231 = vpop.f32.mrb[0].mxu0
    %232 = vdwg.mxu0
    %v234 = vsel %vm151, %v24, 0
    %v237 = vsel %vm151, %v25, 0
    %v240 = vsel %vm151, %v26, 0
    %242 = vmatprep.subr.mxu0 0.0
    %243 = vmatpush1.msra.mxu0 %v225
    %244 = vmatprep.subr.mxu0 0.0
    %245 = vmatpush1.msra.mxu0 %v230
    %246 = vmatprep.subr.mxu0 0.0
    %247 = vmatpush1.msra.mxu0 %v146
    %248 = vmatprep.subr.mxu0 0.0
    %249 = vmatpush1.msra.mxu0 0.0
    %250 = vmatprep.subr.mxu0 0.0
    %251 = vmatpush1.msra.mxu0 0.0
    %252 = vmatprep.subr.mxu0 0.0
    %253 = vmatpush1.msra.mxu0 0.0
    %254 = vmatprep.subr.mxu0 0.0
    %255 = vmatpush1.msra.mxu0 0.0
    %256 = vmatprep.subr.mxu0 0.0
    %257 = vmatpush1.msra.mxu0 0.0
    %258 = vmatprep.subr.mxu0 0.0
    %259 = vmatpush1.msra.mxu0 0.0
    %260 = vmatprep.subr.mxu0 0.0
    %261 = vmatpush1.msra.mxu0 0.0
    %262 = vmatprep.subr.mxu0 0.0
    %263 = vmatpush1.msra.mxu0 0.0
    %264 = vmatprep.subr.mxu0 0.0
    %265 = vmatpush1.msra.mxu0 0.0
    %266 = vmatprep.subr.mxu0 0.0
    %267 = vmatpush1.msra.mxu0 0.0
    %268 = vmatprep.subr.mxu0 0.0
    %269 = vmatpush1.msra.mxu0 0.0
    %270 = vmatprep.subr.mxu0 0.0
    %271 = vmatpush1.msra.mxu0 0.0
    %272 = vmatprep.subr.mxu0 0.0
    %273 = vmatpush1.msra.mxu0 0.0
    %274 = vmatprep.subr.mxu0 0.0
    %275 = vmatpush1.msra.mxu0 0.0
    %276 = vmatprep.subr.mxu0 0.0
    %277 = vmatpush1.msra.mxu0 0.0
    %278 = vmatprep.subr.mxu0 0.0
    %279 = vmatpush1.msra.mxu0 0.0
    %280 = vmatprep.subr.mxu0 0.0
    %281 = vmatpush1.msra.mxu0 0.0
    %282 = vmatprep.subr.mxu0 0.0
    %283 = vmatpush1.msra.mxu0 0.0
    %284 = vmatprep.subr.mxu0 0.0
    %285 = vmatpush1.msra.mxu0 0.0
    %286 = vmatprep.subr.mxu0 0.0
    %287 = vmatpush1.msra.mxu0 0.0
    %288 = vmatprep.subr.mxu0 0.0
    %289 = vmatpush1.msra.mxu0 0.0
    %290 = vmatprep.subr.mxu0 0.0
    %291 = vmatpush1.msra.mxu0 0.0
    %292 = vmatprep.subr.mxu0 0.0
    %293 = vmatpush1.msra.mxu0 0.0
    %294 = vmatprep.subr.mxu0 0.0
    %295 = vmatpush1.msra.mxu0 0.0
    %296 = vmatprep.subr.mxu0 0.0
    %297 = vmatpush1.msra.mxu0 0.0
    %298 = vmatprep.subr.mxu0 0.0
    %299 = vmatpush1.msra.mxu0 0.0
    %300 = vmatprep.subr.mxu0 0.0
    %301 = vmatpush1.msra.mxu0 0.0
    %302 = vmatprep.subr.mxu0 0.0
    %303 = vmatpush1.msra.mxu0 0.0
    %304 = vmatprep.subr.mxu0 0.0
    %305 = vmatpush1.msra.mxu0 0.0
    %306 = vmatprep.mubr.f32.mxu0 0.0
    %307 = vmatmul.mubr.f32.gmra.mrb[0].mxu0 %v234
    %v308 = vpop.f32.mrb[0].mxu0
    %v309 = vadd.f32 0.0, %v308
    %v310 = vpop.f32.mrb[0].mxu0
    %311 = vmatprep.mubr.f32.mxu0 0.0
    %312 = vmatmul.mubr.f32.gmra.mrb[0].mxu0 %v237
    %v313 = vpop.f32.mrb[0].mxu0
    %v314 = vadd.f32 0.0, %v313
    %v315 = vpop.f32.mrb[0].mxu0
    %316 = vmatprep.mubr.f32.mxu0 0.0
    %317 = vmatmul.mubr.f32.gmra.mrb[0].mxu0 %v240
    %v318 = vpop.f32.mrb[0].mxu0
    %v319 = vadd.f32 0.0, %v318
    %v320 = vpop.f32.mrb[0].mxu0
    %321 = vdwg.mxu0
    %v322 = vsel %vm151, %v309, 0.0
    %323 = vadd.xlane.f32.xlu0 %v322
    %v324 = vpop.xlane.xlu0 %323
    %v325 = vsel %vm151, %v314, 0.0
    %326 = vadd.xlane.f32.xlu0 %v325
    %v327 = vpop.xlane.xlu0 %326
    %v328 = vsel %vm151, %v319, 0.0
    %329 = vadd.xlane.f32.xlu0 %v328
    %v330 = vpop.xlane.xlu0 %329
    %v331 = vrcp.pop 32.0
    %v332 = vmul.f32 %v324, %v331
    %v333 = vmul.f32 %v327, %v331
    %v334 = vmul.f32 %v330, %v331
    %v335 = vsub.f32 %v309, %v332
    %v336 = vsub.f32 %v314, %v333
    %v337 = vsub.f32 %v319, %v334
    %v338 = vmul.f32 %v335, %v335
    %v339 = vmul.f32 %v336, %v336
    %v340 = vmul.f32 %v337, %v337
    %v341 = vsel %vm151, %v338, 0.0
    %342 = vadd.xlane.f32.xlu0 %v341
    %v343 = vpop.xlane.xlu0 %342
    %v344 = vsel %vm151, %v339, 0.0
    %345 = vadd.xlane.f32.xlu0 %v344
    %v346 = vpop.xlane.xlu0 %345
    %v347 = vsel %vm151, %v340, 0.0
    %348 = vadd.xlane.f32.xlu0 %v347
    %v349 = vpop.xlane.xlu0 %348
    %v350 = vmul.f32 %v343, %v331
    %v351 = vmul.f32 %v346, %v331
    %v352 = vmul.f32 %v349, %v331
    %v353 = vadd.f32 %v350, 1e-12
    %v354 = vadd.f32 %v351, 1e-12
    %v355 = vadd.f32 %v352, 1e-12
    %v356 = vrsqrt.pop %v353
    %v357 = vrsqrt.pop %v354
    %v358 = vrsqrt.pop %v355
    %v359 = vmul.f32 %v335, %v356
    %v360 = vmul.f32 %v336, %v357
    %v361 = vmul.f32 %v337, %v358
    %v362 = vlaneseq
    %v363 = vshrl.u32 %v362, 7
    %v364 = vsub.s32 0, %v363
    %v365 = vrot.slane %v42, %v364
    %v366 = vmul.f32 %v359, %v365
    %v367 = vmul.f32 %v360, %v365
    %v368 = vmul.f32 %v361, %v365
    %v369 = vlaneseq
    %v370 = vshrl.u32 %v369, 7
    %v371 = vsub.s32 1, %v370
    %v372 = vrot.slane %v42, %v371
    %v373 = vadd.f32 %v366, %v372
    %v374 = vadd.f32 %v367, %v372
    %v375 = vadd.f32 %v368, %v372
    %376 = vst.msk [vmem:[#allocation5] sm:$0xff] %vm151, %v373
    %377 = vst.msk [vmem:[#allocation5 + $0x8] sm:$0xff] %vm151, %v374
    %378 = vst.msk [vmem:[#allocation5 + $0x10] sm:$0xff] %vm151, %v375
    // Predicated region
    $region10: #{tpu_custom_call.1} parent=1 // pred_check
      _
    $region11: #{tpu_custom_call.1} parent=1 // pred_check_branch
      %380 = sbr.rel (0) target = $region13
    $region12: #{tpu_custom_call.1} parent=1 // pred_region
      %s382 = ssub.s32 384, 384
      %383 = vsyncadd [#allocation6], %s382
      %s384 = sshll.u32 [#allocation5], 4
      %s385 = int_to_ptr.vmem [resolvable:$true] %s384
      %390 = dma.vmem_to_hbm [thread:$0]  %s385, 384, %s4, [#allocation6], 128, 128, 8
    $region13: #{tpu_custom_call.1} parent=1 // pred_fallthru
      _
    // Predicated region
    $region14: #{tpu_custom_call.1} parent=1 // pred_check
      _
    $region15: #{tpu_custom_call.1} parent=1 // pred_check_branch
      %392 = sbr.rel (0) target = $region17
    $region16: #{tpu_custom_call.1} parent=1 // pred_region
      %393 = dma.done [#allocation6], 384
    $region17: #{tpu_custom_call.1} parent=1 // pred_fallthru
      _
    %394 = vsyncpa [#allocation6], 1

</llo_original>
